<compile_context>
chip_gen: v5e
topology: v5e:2x2
jax: 0.10.0
libtpu: 0.0.40
codegen_flags: <defaults>
</compile_context>

<pallas_src>
import math

import jax
import jax.numpy as jnp
from jax.experimental import pallas as pl
from jax.experimental.pallas import tpu as pltpu


def _diff_embedding_kernel(wt_ref, mut_ref, w_ref, b_ref, o_ref):
    # VPU diff -> MXU matmul (f32 accumulate) -> VPU bias add + relu.
    delta = mut_ref[...] - wt_ref[...]
    y = jnp.dot(delta, w_ref[...], preferred_element_type=jnp.float32)
    y = y + b_ref[...]                      # (TM, Dp) + (1, Dp) broadcast, f32
    o_ref[...] = jnp.maximum(y, 0.0).astype(o_ref.dtype)


def _round_up(x, m):
    return ((x + m - 1) // m) * m


def diff_embedding_forward(wt_node, mut_node, weight, bias, *,
                           tm_target=1024, compute_dtype=None, out_dtype=None):
    """Forward of DiffEmbeddingLayer.

    wt_node, mut_node: [B, L, D]
    weight:            [D, D]  (PyTorch nn.Linear layout: (out, in))
    bias:              [D]
    compute_dtype:     optional dtype to stream wt/mut/weight in (e.g.
                       jnp.bfloat16 halves HBM traffic; real win when the
                       inputs already live in bf16 upstream).
    out_dtype:         output dtype (defaults to the input dtype).
    """
    B, L, D = wt_node.shape
    M = B * L
    in_dtype = jnp.dtype(wt_node.dtype)
    cdtype = jnp.dtype(compute_dtype) if compute_dtype is not None else in_dtype
    odtype = jnp.dtype(out_dtype) if out_dtype is not None else in_dtype

    # --- lane packing: fold r rows into one lane-dense row when D is small ---
    # r = smallest multiplier with (r * D) % 128 == 0; only pack if the kron'd
    # block-diagonal weight stays small.  Packing keeps the VPU work and the
    # output stores at full 128-lane width (no masked vst.msk partial stores).
    if D % 128 == 0:
        r = 1
    else:
        r = 128 // math.gcd(D, 128)
        if r * D > 1024:
            r = 1  # fallback: last dim not a 128 multiple -> masked stores
    Dp = r * D

    wt2 = wt_node.reshape(M, D)
    mut2 = mut_node.reshape(M, D)
    if cdtype != in_dtype:
        wt2 = wt2.astype(cdtype)
        mut2 = mut2.astype(cdtype)

    rows = pl.cdiv(M, r)
    m_r = rows * r
    if m_r != M:  # rare: only pad up to a multiple of r (never to a tile multiple)
        pad = ((0, m_r - M), (0, 0))
        wt2 = jnp.pad(wt2, pad)
        mut2 = jnp.pad(mut2, pad)
    wt_p = wt2.reshape(rows, Dp)      # contiguous reshape -> bitcast, no HBM pass
    mut_p = mut2.reshape(rows, Dp)

    # Weight / bias (block-diagonal when packed):
    #   [row0|...|row_{r-1}] @ blkdiag(W^T,...,W^T) == [row0 @ W^T | ... ]
    w_t = weight.T.astype(cdtype)                         # (D_in, D_out)
    if r > 1:
        w_blk = jnp.kron(jnp.eye(r, dtype=cdtype), w_t)   # (Dp, Dp)
        b_blk = jnp.tile(bias, r).reshape(1, Dp)
    else:
        w_blk = w_t
        b_blk = bias.reshape(1, Dp)
    b_blk = b_blk.astype(jnp.float32)

    in_isz = cdtype.itemsize
    out_isz = odtype.itemsize
    w_isz = cdtype.itemsize
    w_bytes = Dp * Dp * w_isz

    # Chip-aware VMEM capacity (v5e/v6e: 128 MiB physical, v7x: 64 MiB).
    try:
        cap = int(pltpu.get_tpu_info().vmem_capacity_bytes)
    except Exception:
        cap = 64 << 20  # conservative fallback (v7x physical)

    # Big resident weight: single-buffer it (its index_map is constant).
    single_buffer_w = w_bytes >= (4 << 20)
    n_wbuf = 1 if single_buffer_w else 2

    # --- choose rows-per-tile ---
    tm = min(tm_target, _round_up(max(rows, 1), 8))
    # v7x has 2 TensorCores: keep >= 2 grid tiles when the problem can be split.
    if pl.cdiv(rows, tm) < 2 and rows > 8:
        tm = max(8, _round_up(pl.cdiv(rows, 2), 8))
    # Shrink tm so the double-buffered streamed tiles fit beside the weight.
    row_bytes = Dp * (2 * in_isz + out_isz)
    budget = int(cap * 0.8) - n_wbuf * w_bytes - (4 << 20)
    max_tm = max(8, (budget // (2 * row_bytes)) // 8 * 8)
    tm = min(tm, max_tm)
    # Tiny problems: one exact full-extent block (always a legal block shape).
    if tm >= rows:
        tm = rows

    n_tiles = pl.cdiv(rows, tm)
    grid = (n_tiles,)

    # VMEM budget: 2x (wt + mut + out) tiles + resident weight + bias + headroom.
    vmem_need = 2 * tm * row_bytes + n_wbuf * w_bytes + 2 * Dp * 4 + (2 << 20)
    vmem_limit = int(max(min(vmem_need, int(cap * 0.9)), 4 << 20))

    # Logical (non-redundant) cost, not the r-times block-diagonal work.
    cost = pl.CostEstimate(
        flops=2 * M * D * D + 3 * M * D,
        transcendentals=0,
        bytes_accessed=M * D * (2 * in_isz + out_isz) + D * D * w_isz + D * 4,
    )

    w_spec_kwargs = {}
    if single_buffer_w:
        # Constant index_map -> one buffer halves the resident-weight footprint.
        w_spec_kwargs = dict(pipeline_mode=pl.Buffered(1))

    in_specs = [
        pl.BlockSpec((tm, Dp), lambda i: (i, 0)),            # wt tile
        pl.BlockSpec((tm, Dp), lambda i: (i, 0)),            # mut tile
        pl.BlockSpec((Dp, Dp), lambda i: (0, 0), **w_spec_kwargs),  # weight (resident)
        pl.BlockSpec((1, Dp), lambda i: (0, 0)),             # bias (resident)
    ]
    out_specs = pl.BlockSpec((tm, Dp), lambda i: (i, 0))

    out_p = pl.pallas_call(
        _diff_embedding_kernel,
        out_shape=jax.ShapeDtypeStruct((rows, Dp), odtype),
        grid_spec=pl.GridSpec(grid=grid, in_specs=in_specs, out_specs=out_specs),
        compiler_params=pltpu.CompilerParams(
            dimension_semantics=("parallel",),   # v7x: shard M-tiles over 2 TCs
            vmem_limit_bytes=vmem_limit,
        ),
        cost_estimate=cost,
    )(wt_p, mut_p, w_blk, b_blk)

    out2 = out_p.reshape(m_r, D)
    if m_r != M:
        out2 = out2[:M]
    return out2.reshape(B, L, D)


if __name__ == "__main__":
    key = jax.random.PRNGKey(0)
    B, L, D = 2, 8, 32  # batch, seq, d_node

    k_wt, k_mut, k_w, k_b = jax.random.split(key, 4)
    wt_node = jax.random.normal(k_wt, (B, L, D), dtype=jnp.float32)
    mut_node = jax.random.normal(k_mut, (B, L, D), dtype=jnp.float32)

    # Deterministic "nn.Linear(d_node, d_node)" parameters (PyTorch layout).
    bound = 1.0 / (D ** 0.5)
    weight = jax.random.uniform(k_w, (D, D), minval=-bound, maxval=bound,
                                dtype=jnp.float32)
    bias = jax.random.uniform(k_b, (D,), minval=-bound, maxval=bound,
                              dtype=jnp.float32)

    out = diff_embedding_forward(wt_node, mut_node, weight, bias)
    out = jax.block_until_ready(out)

    # Pure-JAX reference of the forward semantics.
    ref = jnp.maximum((mut_node - wt_node) @ weight.T + bias, 0.0)
    assert out.shape == (B, L, D)
    # Loose tolerance: robust to MXU f32 precision modes (bf16-pass matmul),
    # still far below any structural-error magnitude.
    assert jnp.allclose(out, ref, atol=2e-2, rtol=2e-2), \
        float(jnp.max(jnp.abs(out - ref)))

    print("KERNEL_OK")
</pallas_src>

<mosaic_0001>
module attributes {stable_mosaic.version = 11 : i64} {
  func.func @_diff_embedding_kernel(%arg0: i32, %arg1: memref<4x128xf32, #tpu.memory_space<vmem>>, %arg2: memref<4x128xf32, #tpu.memory_space<vmem>>, %arg3: memref<128x128xf32, #tpu.memory_space<vmem>>, %arg4: memref<1x128xf32, #tpu.memory_space<vmem>>, %arg5: memref<4x128xf32, #tpu.memory_space<vmem>>) attributes {dimension_semantics = [#tpu.dimension_semantics<parallel>], iteration_bounds = array<i64: 1>, scalar_prefetch = 0 : i64, scratch_operands = 0 : i64, tpu.core_type = #tpu.core_type<tc>, window_params = [{transform_indices = @transform_0, window_bounds = array<i64: 4, 128>}, {transform_indices = @transform_1, window_bounds = array<i64: 4, 128>}, {pipeline_mode = #tpu.pipeline_mode<synchronous>, transform_indices = @transform_2, window_bounds = array<i64: 128, 128>}, {pipeline_mode = #tpu.pipeline_mode<synchronous>, transform_indices = @transform_3, window_bounds = array<i64: 1, 128>}, {transform_indices = @transform_4, window_bounds = array<i64: 4, 128>}]} {
    %c0 = arith.constant 0 : index
    %c0_0 = arith.constant 0 : index
    %0 = vector.load %arg2[%c0, %c0_0] : memref<4x128xf32, #tpu.memory_space<vmem>>, vector<4x128xf32>
    %c0_1 = arith.constant 0 : index
    %c0_2 = arith.constant 0 : index
    %1 = vector.load %arg1[%c0_1, %c0_2] : memref<4x128xf32, #tpu.memory_space<vmem>>, vector<4x128xf32>
    %2 = arith.subf %0, %1 : vector<4x128xf32>
    %c0_3 = arith.constant 0 : index
    %c0_4 = arith.constant 0 : index
    %3 = vector.load %arg3[%c0_3, %c0_4] : memref<128x128xf32, #tpu.memory_space<vmem>>, vector<128x128xf32>
    %cst = arith.constant dense<0.000000e+00> : vector<4x128xf32>
    %4 = tpu.matmul %2, %3, %cst {dimension_numbers = #tpu.dot_dimension_numbers<[1], [0], [0], [1], [0, 0, 1, 1], [], []>} : vector<4x128xf32>, vector<128x128xf32>, vector<4x128xf32> -> vector<4x128xf32>
    %c0_5 = arith.constant 0 : index
    %c0_6 = arith.constant 0 : index
    %5 = vector.load %arg4[%c0_5, %c0_6] : memref<1x128xf32, #tpu.memory_space<vmem>>, vector<1x128xf32>
    %6 = vector.broadcast %5 : vector<1x128xf32> to vector<4x128xf32>
    %7 = arith.addf %4, %6 : vector<4x128xf32>
    %cst_7 = arith.constant 0.000000e+00 : f32
    %8 = vector.broadcast %cst_7 : f32 to vector<4x128xf32>
    %9 = arith.maximumf %7, %8 : vector<4x128xf32>
    %c0_8 = arith.constant 0 : index
    %c0_9 = arith.constant 0 : index
    %10 = vector.load %arg5[%c0_8, %c0_9] : memref<4x128xf32, #tpu.memory_space<vmem>>, vector<4x128xf32>
    tpu.vector_store %arg5[%c0_8, %c0_9], %9 {strides = array<i32>} : memref<4x128xf32, #tpu.memory_space<vmem>>, vector<4x128xf32>,
    return
  }
  func.func @transform_0(%arg0: i32) -> (i32, i32) {
    %c0_i32 = arith.constant 0 : i32
    %c0_i32_0 = arith.constant 0 : i32
    return %arg0, %c0_i32 : i32, i32
  }
  func.func @transform_1(%arg0: i32) -> (i32, i32) {
    %c0_i32 = arith.constant 0 : i32
    %c0_i32_0 = arith.constant 0 : i32
    return %arg0, %c0_i32 : i32, i32
  }
  func.func @transform_2(%arg0: i32) -> (i32, i32) {
    %c0_i32 = arith.constant 0 : i32
    %c0_i32_0 = arith.constant 0 : i32
    %c0_i32_1 = arith.constant 0 : i32
    return %c0_i32, %c0_i32_0 : i32, i32
  }
  func.func @transform_3(%arg0: i32) -> (i32, i32) {
    %c0_i32 = arith.constant 0 : i32
    %c0_i32_0 = arith.constant 0 : i32
    %c0_i32_1 = arith.constant 0 : i32
    return %c0_i32, %c0_i32_0 : i32, i32
  }
  func.func @transform_4(%arg0: i32) -> (i32, i32) {
    %c0_i32 = arith.constant 0 : i32
    %c0_i32_0 = arith.constant 0 : i32
    return %arg0, %c0_i32 : i32, i32
  }
}

</mosaic_0001>

<llo_original>
// kernel: tpu_custom_call.1
$region0: #{tpu_custom_call.1}
  #allocation0 [shape = 'u32[]', space=smem, size = 0x4, offset = 0x4, fixed_abs, tag = 'smem constant byte address 0x4 - core index']
  #allocation1 [shape = 'u32[72,128]{1,0:T(1,128)}', space=vmem, size = 0x9000, scoped, tag = 'internal scratch']
  %s0 = inlined_call_operand.hbm [shape: f32[4,128], index: 0, kind: input, shape index: {}]
  %s1 = inlined_call_operand.hbm [shape: f32[4,128], index: 1, kind: input, shape index: {}]
  %s2 = inlined_call_operand.hbm [shape: f32[128,128], index: 2, kind: input, shape index: {}]
  %s3 = inlined_call_operand.vmem [shape: f32[1,128], index: 3, kind: input, shape index: {}]
  %s4 = inlined_call_operand.hbm [shape: f32[4,128], index: 4, kind: output, shape index: {}]
  %s5 = sld [smem:[#allocation0]]
  $region38: #{tpu_custom_call.1} parent=0
    _
  %s7 = ssub.s32 1, %s5
  %s8 = scalar_select 0, %s7, %s5
  $region1: #{tpu_custom_call.1} parent=0
    #allocation2 [shape = 'u8[2048]{0}', space=vmem, size = 0x800, scoped, tag = 'input window, operand 0, single buffered']
    #allocation3 [shape = 's32[1]{0}', space=sflag, size = 0x4, scoped, tag = 'scoped memory for tpu_custom_call.1']
    #allocation4 [shape = 's32[1]{0}', space=sflag, size = 0x4, scoped, tag = 'scoped memory for tpu_custom_call.1']
    #allocation5 [shape = 'u8[2048]{0}', space=vmem, size = 0x800, scoped, tag = 'input window, operand 1, single buffered']
    #allocation6 [shape = 's32[1]{0}', space=sflag, size = 0x4, scoped, tag = 'scoped memory for tpu_custom_call.1']
    #allocation7 [shape = 'u8[65536]{0}', space=vmem, size = 0x10000, scoped, tag = 'input window, operand 2, single buffered']
    #allocation8 [shape = 'u8[2048]{0}', space=vmem, size = 0x800, scoped, tag = 'output window, operand 0, single buffered']
    %9 = vsyncpa [#allocation3], 0
    %10 = vsyncpa [#allocation6], 0
    %11 = vsyncpa [#allocation4], 0
    // Predicated region
    $region2: #{tpu_custom_call.1} parent=1 // pred_check
      _
    $region3: #{tpu_custom_call.1} parent=1 // pred_check_branch
      %13 = sbr.rel (0) target = $region5
    $region4: #{tpu_custom_call.1} parent=1 // pred_region
      %15 = vsyncadd [#allocation3], 0
      %s17 = sshll.u32 %s0, 4
      %s18 = int_to_ptr.hbm [resolvable:$true] %s17
      %s19 = sshll.u32 [#allocation2], 4
      %s20 = int_to_ptr.vmem [resolvable:$true] %s19
      %22 = dma.hbm_to_vmem [thread:$0]  %s18, 64, %s20, [#allocation3]
    $region5: #{tpu_custom_call.1} parent=1 // pred_fallthru
      _
    // Predicated region
    $region6: #{tpu_custom_call.1} parent=1 // pred_check
      _
    $region7: #{tpu_custom_call.1} parent=1 // pred_check_branch
      %24 = sbr.rel (0) target = $region9
    $region8: #{tpu_custom_call.1} parent=1 // pred_region
      %26 = vsyncadd [#allocation6], 0
      %s28 = sshll.u32 %s1, 4
      %s29 = int_to_ptr.hbm [resolvable:$true] %s28
      %s30 = sshll.u32 [#allocation5], 4
      %s31 = int_to_ptr.vmem [resolvable:$true] %s30
      %33 = dma.hbm_to_vmem [thread:$0]  %s29, 64, %s31, [#allocation6]
    $region9: #{tpu_custom_call.1} parent=1 // pred_fallthru
      _
    // Predicated region
    $region10: #{tpu_custom_call.1} parent=1 // pred_check
      _
    $region11: #{tpu_custom_call.1} parent=1 // pred_check_branch
      %35 = sbr.rel (0) target = $region13
    $region12: #{tpu_custom_call.1} parent=1 // pred_region
      %37 = vsyncadd [#allocation6], 0
      %s38 = sshll.u32 %s2, 4
      %s39 = int_to_ptr.hbm [resolvable:$true] %s38
      %s40 = sshll.u32 [#allocation7], 4
      %s41 = int_to_ptr.vmem [resolvable:$true] %s40
      %46 = dma.hbm_to_vmem [thread:$0]  %s39, 2048, %s41, [#allocation6], 128, 128, 8
    $region13: #{tpu_custom_call.1} parent=1 // pred_fallthru
      _
    // Predicated region
    $region14: #{tpu_custom_call.1} parent=1 // pred_check
      _
    $region15: #{tpu_custom_call.1} parent=1 // pred_check_branch
      %48 = sbr.rel (0) target = $region17
    $region16: #{tpu_custom_call.1} parent=1 // pred_region
      _
    $region17: #{tpu_custom_call.1} parent=1 // pred_fallthru
      _
    // Predicated region
    $region18: #{tpu_custom_call.1} parent=1 // pred_check
      _
    $region19: #{tpu_custom_call.1} parent=1 // pred_check_branch
      %50 = sbr.rel (0) target = $region21
    $region20: #{tpu_custom_call.1} parent=1 // pred_region
      %52 = dma.done [#allocation3], 64
    $region21: #{tpu_custom_call.1} parent=1 // pred_fallthru
      _
    // Predicated region
    $region22: #{tpu_custom_call.1} parent=1 // pred_check
      _
    $region23: #{tpu_custom_call.1} parent=1 // pred_check_branch
      %54 = sbr.rel (0) target = $region25
    $region24: #{tpu_custom_call.1} parent=1 // pred_region
      %56 = dma.done [#allocation6], 64
    $region25: #{tpu_custom_call.1} parent=1 // pred_fallthru
      _
    // Predicated region
    $region26: #{tpu_custom_call.1} parent=1 // pred_check
      _
    $region27: #{tpu_custom_call.1} parent=1 // pred_check_branch
      %58 = sbr.rel (0) target = $region29
    $region28: #{tpu_custom_call.1} parent=1 // pred_region
      %60 = dma.done [#allocation6], 2048
    $region29: #{tpu_custom_call.1} parent=1 // pred_fallthru
      _
    %v61 = vld [vmem:[#allocation5] sm:$0xf]
    %v62 = vld [vmem:[#allocation2] sm:$0xf]
    %v63 = vsub.f32 %v61, %v62
    %v64 = vld [vmem:[#allocation7] sm:$0xff]
    %v65 = vld [vmem:[#allocation7 + $0x8] sm:$0xff]
    %v66 = vld [vmem:[#allocation7 + $0x10] sm:$0xff]
    %v67 = vld [vmem:[#allocation7 + $0x18] sm:$0xff]
    %v68 = vld [vmem:[#allocation7 + $0x20] sm:$0xff]
    %v69 = vld [vmem:[#allocation7 + $0x28] sm:$0xff]
    %v70 = vld [vmem:[#allocation7 + $0x30] sm:$0xff]
    %v71 = vld [vmem:[#allocation7 + $0x38] sm:$0xff]
    %v72 = vld [vmem:[#allocation7 + $0x40] sm:$0xff]
    %v73 = vld [vmem:[#allocation7 + $0x48] sm:$0xff]
    %v74 = vld [vmem:[#allocation7 + $0x50] sm:$0xff]
    %v75 = vld [vmem:[#allocation7 + $0x58] sm:$0xff]
    %v76 = vld [vmem:[#allocation7 + $0x60] sm:$0xff]
    %v77 = vld [vmem:[#allocation7 + $0x68] sm:$0xff]
    %v78 = vld [vmem:[#allocation7 + $0x70] sm:$0xff]
    %v79 = vld [vmem:[#allocation7 + $0x78] sm:$0xff]
    %v80 = vld [vmem:[%s3] sm:$0x1]
    %v82 = vperm.slane %v80, 0
    %84 = vmatpush.msra.mxu0 %v79
    %85 = vmatpush.msra.mxu0 %v78
    %86 = vmatpush.msra.mxu0 %v77
    %87 = vmatpush.msra.mxu0 %v76
    %88 = vmatpush.msra.mxu0 %v75
    %89 = vmatpush.msra.mxu0 %v74
    %90 = vmatpush.msra.mxu0 %v73
    %91 = vmatpush.msra.mxu0 %v72
    %92 = vmatpush.msra.mxu0 %v71
    %93 = vmatpush.msra.mxu0 %v70
    %94 = vmatpush.msra.mxu0 %v69
    %95 = vmatpush.msra.mxu0 %v68
    %96 = vmatpush.msra.mxu0 %v67
    %97 = vmatpush.msra.mxu0 %v66
    %98 = vmatpush.msra.mxu0 %v65
    %99 = vmatpush.msra.mxu0 %v64
    %100 = vmatmul.f32.gmra.mxu0 %v63
    %v101 = vpop.f32.mrf.mxu0
    %v102 = vadd.f32 %v82, %v101
    %103 = vdwg.mxu0
    %v104 = vmax.f32 %v102, 0.0
    %105 = vst [vmem:[#allocation8] sm:$0xf] %v104
    // Predicated region
    $region30: #{tpu_custom_call.1} parent=1 // pred_check
      _
    $region31: #{tpu_custom_call.1} parent=1 // pred_check_branch
      %107 = sbr.rel (0) target = $region33
    $region32: #{tpu_custom_call.1} parent=1 // pred_region
      %109 = vsyncadd [#allocation4], 0
      %s111 = sshll.u32 [#allocation8], 4
      %s112 = int_to_ptr.vmem [resolvable:$true] %s111
      %s113 = sshll.u32 %s4, 4
      %s114 = int_to_ptr.hbm [resolvable:$true] %s113
      %116 = dma.vmem_to_hbm [thread:$0]  %s112, 64, %s114, [#allocation4]
    $region33: #{tpu_custom_call.1} parent=1 // pred_fallthru
      _
    // Predicated region
    $region34: #{tpu_custom_call.1} parent=1 // pred_check
      _
    $region35: #{tpu_custom_call.1} parent=1 // pred_check_branch
      %118 = sbr.rel (0) target = $region37
    $region36: #{tpu_custom_call.1} parent=1 // pred_region
      %120 = dma.done [#allocation4], 64
    $region37: #{tpu_custom_call.1} parent=1 // pred_fallthru
      _
    %121 = vsyncpa [#allocation3], 1
    %122 = vsyncpa [#allocation6], 1
    %123 = vsyncpa [#allocation4], 1

</llo_original>
